<compile_context>
chip_gen: v5e
topology: v5e:2x2
jax: 0.10.0
libtpu: 0.0.40
codegen_flags: <defaults>
</compile_context>

<pallas_src>
import functools
import math

import jax
import jax.numpy as jnp
from jax.experimental import pallas as pl
from jax.experimental.pallas import tpu as pltpu


# ------------------------------ kernels -------------------------------------


def _linear_kernel(x_ref, enc_ref, o_ref):
    # embedded = x @ enc : MXU matmul, f32 accumulation.
    o_ref[...] = jnp.dot(
        x_ref[...].astype(enc_ref.dtype),
        enc_ref[...],
        preferred_element_type=jnp.float32,
    ).astype(o_ref.dtype)


def _nonlinear_kernel(x_ref, enc_ref, enc2_ref, b1_ref, b2_ref, o_ref):
    # Biases read once per tile into f32 vregs (no per-use rebroadcast).
    b1 = b1_ref[...]
    b2 = b2_ref[...]
    emb = jnp.dot(
        x_ref[...].astype(enc_ref.dtype),
        enc_ref[...],
        preferred_element_type=jnp.float32,
    )
    # Scale + tanh in f32 (safe on v5e: no bf16 VPU/EUP path there).
    emb = jnp.tanh(emb * b1)
    emb = jnp.dot(
        emb.astype(enc2_ref.dtype),
        enc2_ref[...],
        preferred_element_type=jnp.float32,
    )
    o_ref[...] = jnp.tanh(emb * b2).astype(o_ref.dtype)


# ------------------------------ tiling helpers --------------------------------


_TM_MAX = 4096            # cap on folded rows per grid step
_VMEM_BUDGET = 12 << 20   # bytes for double-buffered x/out tiles (v5e-safe)
_SPLIT_ROWS = 512         # min folded rows per tile before forcing a 2-way split


def _cdiv(a, b):
    return -(-a // b)


def _round_up(n, m):
    return _cdiv(n, m) * m


def _choose_fold(embedding_size):
    # Fold consecutive seq rows into lanes so the output last dim fills a
    # 128-lane vreg (lane-dense vst instead of masked partial stores).
    if embedding_size <= 128 and 128 % embedding_size == 0:
        return 128 // embedding_size
    return 1


def _choose_tiling(s_f, fi, fe, x_itemsize):
    """Pick (tile_rows, n_tiles) for the folded-row grid axis."""
    # Double-buffered x tile + f32 out tile per folded row.
    row_bytes = 2 * (fi * x_itemsize + fe * 4)
    cap = min(_TM_MAX, max(8, (_VMEM_BUDGET // row_bytes) // 8 * 8))
    if s_f <= cap:
        if s_f >= 2 * _SPLIT_ROWS:
            # Two balanced tiles so the "parallel" grid axis can feed both
            # v7x TensorCores (one extra ~0.35us step elsewhere is noise).
            tm = _round_up(_cdiv(s_f, 2), 8)
        else:
            return s_f, 1          # single full-extent block: zero row padding
    else:
        n = _cdiv(s_f, cap)
        tm = _round_up(_cdiv(s_f, n), 8)   # balanced tiles, ragged last block
    return tm, _cdiv(s_f, tm)


# ------------------------------ params ---------------------------------------


def init_params(key, input_size, embedding_size=32, nonlinear=False):
    """Deterministic init mirroring the PyTorch module's __init__."""
    var = math.sqrt(input_size + embedding_size)
    k_enc, k_enc2, k_b1, k_b2 = jax.random.split(key, 4)
    params = {
        "enc": jax.random.uniform(
            k_enc, (input_size, embedding_size), jnp.float32,
            minval=-1.0 / var, maxval=1.0 / var,
        )
    }
    if nonlinear:
        params["enc2"] = jax.random.uniform(
            k_enc2, (embedding_size, embedding_size), jnp.float32,
            minval=-1.0 / var, maxval=1.0 / var,
        )
        params["bias1"] = jax.random.uniform(
            k_b1, (embedding_size,), jnp.float32, minval=-0.001, maxval=0.001
        )
        params["bias2"] = jax.random.uniform(
            k_b2, (embedding_size,), jnp.float32, minval=-0.001, maxval=0.001
        )
    return params


def prepare_params(params, weight_dtype=jnp.bfloat16):
    """One-time folding of weights/biases into the kernel's lane-dense layout.

    Hoisted out of the per-call path: call once after init / checkpoint load
    and reuse on every forward call.  weight_dtype=jnp.float32 is the
    exact-parity fallback (f32 MXU operands) at 2x weight bandwidth.
    """
    input_size, embedding_size = params["enc"].shape
    fold = _choose_fold(embedding_size)
    eye = jnp.eye(fold, dtype=jnp.float32)
    kparams = {"enc_f": jnp.kron(eye, params["enc"]).astype(weight_dtype)}
    if "enc2" in params:
        kparams["enc2_f"] = jnp.kron(eye, params["enc2"]).astype(weight_dtype)
        kparams["b1_f"] = jnp.tile(
            params["bias1"].reshape(1, embedding_size), (1, fold)
        ).astype(jnp.float32)
        kparams["b2_f"] = jnp.tile(
            params["bias2"].reshape(1, embedding_size), (1, fold)
        ).astype(jnp.float32)
    return kparams


# ------------------------------ wrapper ---------------------------------------


@functools.partial(jax.jit, static_argnames=("nonlinear", "out_dtype"))
def state_transform_forward(x, kparams, nonlinear=False, out_dtype=jnp.float32):
    """x: [S, I] -> [S, E].  kparams comes from prepare_params()."""
    S, I = x.shape
    enc_f = kparams["enc_f"]
    Fi, Fe = enc_f.shape
    fold = Fi // I
    E = Fe // fold

    # ---- layout plumbing (static shape math; reshapes are free under jit) ---
    s_f = _cdiv(S, fold)                 # folded row count
    s_pad = s_f * fold
    if s_pad != S:                       # pad only when S is not fold-aligned
        x = jnp.pad(x, ((0, s_pad - S), (0, 0)))
    x_f = x.reshape(s_f, Fi)             # contiguous reshape: metadata only

    tm, n_tiles = _choose_tiling(s_f, Fi, Fe, x.dtype.itemsize)

    # x / out tiled over the folded seq axis; weights & biases pinned to
    # block (0, 0) so they stay VMEM-resident across grid steps.
    # (pipeline_mode=pl.Buffered(1) on the pinned weights would save a spare
    #  buffer; skipped as it's only tens of KiB.)
    x_spec = pl.BlockSpec((tm, Fi), lambda i: (i, 0))
    out_spec = pl.BlockSpec((tm, Fe), lambda i: (i, 0))

    def w_spec(shape):
        return pl.BlockSpec(shape, lambda i: (0, 0))

    out_shape = jax.ShapeDtypeStruct((s_f, Fe), out_dtype)
    compiler_params = pltpu.CompilerParams(
        dimension_semantics=("parallel",),   # independent rows: dual-TC split
    )

    flops = 2 * s_f * Fi * Fe
    transcendentals = 0
    bytes_accessed = (
        x_f.size * x.dtype.itemsize
        + s_f * Fe * jnp.dtype(out_dtype).itemsize
        + enc_f.size * enc_f.dtype.itemsize
    )

    if not nonlinear:
        out_f = pl.pallas_call(
            _linear_kernel,
            out_shape=out_shape,
            grid=(n_tiles,),
            in_specs=[x_spec, w_spec((Fi, Fe))],
            out_specs=out_spec,
            compiler_params=compiler_params,
            cost_estimate=pl.CostEstimate(
                flops=flops,
                transcendentals=transcendentals,
                bytes_accessed=bytes_accessed,
            ),
        )(x_f, enc_f)
    else:
        enc2_f, b1_f, b2_f = kparams["enc2_f"], kparams["b1_f"], kparams["b2_f"]
        flops += 2 * s_f * Fe * Fe
        transcendentals = 2 * s_f * Fe
        bytes_accessed += (
            enc2_f.size * enc2_f.dtype.itemsize + (b1_f.size + b2_f.size) * 4
        )
        out_f = pl.pallas_call(
            _nonlinear_kernel,
            out_shape=out_shape,
            grid=(n_tiles,),
            in_specs=[
                x_spec,
                w_spec((Fi, Fe)),
                w_spec((Fe, Fe)),
                w_spec((1, Fe)),
                w_spec((1, Fe)),
            ],
            out_specs=out_spec,
            compiler_params=compiler_params,
            cost_estimate=pl.CostEstimate(
                flops=flops,
                transcendentals=transcendentals,
                bytes_accessed=bytes_accessed,
            ),
        )(x_f, enc_f, enc2_f, b1_f, b2_f)

    # Un-fold the lane-packed rows; slice only when fold-padding was added.
    out = out_f.reshape(s_pad, E)
    if s_pad != S:
        out = out[:S]
    return out


# ------------------------------ reference / demo ------------------------------


def _reference(x, params, nonlinear):
    emb = x @ params["enc"]
    if nonlinear:
        emb = emb * params["bias1"]
        emb = jnp.tanh(emb) @ params["enc2"]
        emb = jnp.tanh(emb * params["bias2"])
    return emb


if __name__ == "__main__":
    seq_len = 8
    input_size = 16
    embedding_size = 32

    key = jax.random.PRNGKey(0)
    k_x, k_p = jax.random.split(key)
    x = jax.random.normal(k_x, (seq_len, input_size), jnp.float32)

    # bf16 MXU operands (f32 accumulation retained) -> ~1e-2 relative error.
    ATOL, RTOL = 2e-2, 5e-2

    # linear path
    params_lin = init_params(k_p, input_size, embedding_size, nonlinear=False)
    kparams_lin = prepare_params(params_lin)          # one-time folding
    out_lin = state_transform_forward(x, kparams_lin, nonlinear=False)
    out_lin = jax.block_until_ready(out_lin)
    ref_lin = _reference(x, params_lin, nonlinear=False)
    assert out_lin.shape == ref_lin.shape
    assert jnp.allclose(out_lin, ref_lin, atol=ATOL, rtol=RTOL), "linear mismatch"

    # nonlinear path
    params_nl = init_params(k_p, input_size, embedding_size, nonlinear=True)
    kparams_nl = prepare_params(params_nl)            # one-time folding
    out_nl = state_transform_forward(x, kparams_nl, nonlinear=True)
    out_nl = jax.block_until_ready(out_nl)
    ref_nl = _reference(x, params_nl, nonlinear=True)
    assert out_nl.shape == ref_nl.shape
    assert jnp.allclose(out_nl, ref_nl, atol=ATOL, rtol=RTOL), "nonlinear mismatch"

    print("KERNEL_OK")
</pallas_src>

<mosaic_0001>
module attributes {stable_mosaic.version = 11 : i64} {
  func.func @_linear_kernel(%arg0: i32, %arg1: memref<2x64xf32, #tpu.memory_space<vmem>>, %arg2: memref<64x128xbf16, #tpu.memory_space<vmem>>, %arg3: memref<2x128xf32, #tpu.memory_space<vmem>>) attributes {dimension_semantics = [#tpu.dimension_semantics<parallel>], iteration_bounds = array<i64: 1>, scalar_prefetch = 0 : i64, scratch_operands = 0 : i64, tpu.core_type = #tpu.core_type<tc>, window_params = [{transform_indices = @transform_0, window_bounds = array<i64: 2, 64>}, {pipeline_mode = #tpu.pipeline_mode<synchronous>, transform_indices = @transform_1, window_bounds = array<i64: 64, 128>}, {transform_indices = @transform_2, window_bounds = array<i64: 2, 128>}]} {
    %c0 = arith.constant 0 : index
    %c0_0 = arith.constant 0 : index
    %0 = vector.load %arg1[%c0, %c0_0] : memref<2x64xf32, #tpu.memory_space<vmem>>, vector<2x64xf32>
    %1 = arith.truncf %0 : vector<2x64xf32> to vector<2x64xbf16>
    %c0_1 = arith.constant 0 : index
    %c0_2 = arith.constant 0 : index
    %2 = vector.load %arg2[%c0_1, %c0_2] : memref<64x128xbf16, #tpu.memory_space<vmem>>, vector<64x128xbf16>
    %cst = arith.constant dense<0.000000e+00> : vector<2x128xf32>
    %3 = tpu.matmul %1, %2, %cst {dimension_numbers = #tpu.dot_dimension_numbers<[1], [0], [0], [1], [0, 0, 1, 1], [], []>} : vector<2x64xbf16>, vector<64x128xbf16>, vector<2x128xf32> -> vector<2x128xf32>
    %c0_3 = arith.constant 0 : index
    %c0_4 = arith.constant 0 : index
    %4 = vector.load %arg3[%c0_3, %c0_4] : memref<2x128xf32, #tpu.memory_space<vmem>>, vector<2x128xf32>
    tpu.vector_store %arg3[%c0_3, %c0_4], %3 {strides = array<i32>} : memref<2x128xf32, #tpu.memory_space<vmem>>, vector<2x128xf32>,
    return
  }
  func.func @transform_0(%arg0: i32) -> (i32, i32) {
    %c0_i32 = arith.constant 0 : i32
    %c0_i32_0 = arith.constant 0 : i32
    return %arg0, %c0_i32 : i32, i32
  }
  func.func @transform_1(%arg0: i32) -> (i32, i32) {
    %c0_i32 = arith.constant 0 : i32
    %c0_i32_0 = arith.constant 0 : i32
    %c0_i32_1 = arith.constant 0 : i32
    return %c0_i32, %c0_i32_0 : i32, i32
  }
  func.func @transform_2(%arg0: i32) -> (i32, i32) {
    %c0_i32 = arith.constant 0 : i32
    %c0_i32_0 = arith.constant 0 : i32
    return %arg0, %c0_i32 : i32, i32
  }
}

</mosaic_0001>

<llo_original>
// kernel: state_transform_forward.1
$region0: #{state_transform_forward.1}
  #allocation0 [shape = 'u32[]', space=smem, size = 0x4, offset = 0x4, fixed_abs, tag = 'smem constant byte address 0x4 - core index']
  #allocation1 [shape = 'u32[72,128]{1,0:T(1,128)}', space=vmem, size = 0x9000, scoped, tag = 'internal scratch']
  %s0 = inlined_call_operand.vmem [shape: f32[2,64], index: 0, kind: input, shape index: {}]
  %s1 = inlined_call_operand.hbm [shape: bf16[64,128], index: 1, kind: input, shape index: {}]
  %s2 = inlined_call_operand.vmem [shape: f32[2,128], index: 2, kind: output, shape index: {}]
  %s3 = sld [smem:[#allocation0]]
  $region22: #{state_transform_forward.1} parent=0
    _
  %s5 = ssub.s32 1, %s3
  %s6 = scalar_select 0, %s5, %s3
  $region1: #{state_transform_forward.1} parent=0
    #allocation2 [shape = 'u8[16384]{0}', space=vmem, size = 0x4000, scoped, tag = 'input window, operand 1, single buffered']
    #allocation3 [shape = 's32[1]{0}', space=sflag, size = 0x4, scoped, tag = 'scoped memory for state_transform_forward.1']
    %7 = vsyncpa [#allocation3], 0
    // Predicated region
    $region2: #{state_transform_forward.1} parent=1 // pred_check
      _
    $region3: #{state_transform_forward.1} parent=1 // pred_check_branch
      %9 = sbr.rel (0) target = $region5
    $region4: #{state_transform_forward.1} parent=1 // pred_region
      _
    $region5: #{state_transform_forward.1} parent=1 // pred_fallthru
      _
    // Predicated region
    $region6: #{state_transform_forward.1} parent=1 // pred_check
      _
    $region7: #{state_transform_forward.1} parent=1 // pred_check_branch
      %11 = sbr.rel (0) target = $region9
    $region8: #{state_transform_forward.1} parent=1 // pred_region
      %13 = vsyncadd [#allocation3], 0
      %s14 = sshll.u32 %s1, 4
      %s15 = int_to_ptr.hbm [resolvable:$true] %s14
      %s16 = sshll.u32 [#allocation2], 4
      %s17 = int_to_ptr.vmem [resolvable:$true] %s16
      %22 = dma.hbm_to_vmem [thread:$0]  %s15, 512, %s17, [#allocation3], 64, 64, 4
    $region9: #{state_transform_forward.1} parent=1 // pred_fallthru
      _
    // Predicated region
    $region10: #{state_transform_forward.1} parent=1 // pred_check
      _
    $region11: #{state_transform_forward.1} parent=1 // pred_check_branch
      %24 = sbr.rel (0) target = $region13
    $region12: #{state_transform_forward.1} parent=1 // pred_region
      %26 = dma.done [#allocation3], 512
    $region13: #{state_transform_forward.1} parent=1 // pred_fallthru
      _
    %v28 = vld [vmem:[%s0] sm:$0x3]
    %v29 = vpack.c.bf16 %v28, %v28
    %v30 = vld [vmem:[#allocation2] sm:$0xf]
    %v31 = vld [vmem:[#allocation2 + $0x4] sm:$0xf]
    %v32 = vld [vmem:[#allocation2 + $0x8] sm:$0xf]
    %v33 = vld [vmem:[#allocation2 + $0xc] sm:$0xf]
    %v34 = vld [vmem:[#allocation2 + $0x10] sm:$0xf]
    %v35 = vld [vmem:[#allocation2 + $0x14] sm:$0xf]
    %v36 = vld [vmem:[#allocation2 + $0x18] sm:$0xf]
    %v37 = vld [vmem:[#allocation2 + $0x1c] sm:$0xf]
    %v46 = vunpack.c.l.b16 %v30
    %v47 = vunpack.c.l.b16 %v31
    %v48 = vunpack.c.l.b16 %v32
    %v49 = vunpack.c.l.b16 %v33
    %v50 = vunpack.c.l.b16 %v34
    %v51 = vunpack.c.l.b16 %v35
    %v52 = vunpack.c.l.b16 %v36
    %v53 = vunpack.c.l.b16 %v37
    %v54 = vpack.c.b16 %v47, %v46
    %v55 = vpack.c.b16 %v49, %v48
    %v56 = vpack.c.b16 %v51, %v50
    %v57 = vpack.c.b16 %v53, %v52
    %vm62 = vcmask 523264
    %v64 = vsel %vm62, %v29, 0
    %66 = vmatpush.bf16.msra.mxu0 0
    %67 = vmatpush.bf16.msra.mxu0 0
    %68 = vmatpush.bf16.msra.mxu0 0
    %69 = vmatpush.bf16.msra.mxu0 0
    %70 = vmatpush.bf16.msra.mxu0 %v57
    %71 = vmatpush.bf16.msra.mxu0 %v56
    %72 = vmatpush.bf16.msra.mxu0 %v55
    %73 = vmatpush.bf16.msra.mxu0 %v54
    %74 = vmatmul.bf16.gmra.mxu0 %v64
    %v75 = vpop.f32.mrf.mxu0
    %v76 = vadd.f32 0.0, %v75
    %v77 = vpop.f32.mrf.mxu0
    %78 = vdwg.mxu0
    %79 = vst [vmem:[%s2] sm:$0x3] %v76
    // Predicated region
    $region14: #{state_transform_forward.1} parent=1 // pred_check
      _
    $region15: #{state_transform_forward.1} parent=1 // pred_check_branch
      %81 = sbr.rel (0) target = $region17
    $region16: #{state_transform_forward.1} parent=1 // pred_region
      _
    $region17: #{state_transform_forward.1} parent=1 // pred_fallthru
      _
    // Predicated region
    $region18: #{state_transform_forward.1} parent=1 // pred_check
      _
    $region19: #{state_transform_forward.1} parent=1 // pred_check_branch
      %83 = sbr.rel (0) target = $region21
    $region20: #{state_transform_forward.1} parent=1 // pred_region
      _
    $region21: #{state_transform_forward.1} parent=1 // pred_fallthru
      _
    %84 = vsyncpa [#allocation3], 1

</llo_original>
